<compile_context>
chip_gen: v5e
topology: v5e:2x2
jax: 0.10.0
libtpu: 0.0.40
codegen_flags: <defaults>
</compile_context>

<pallas_src>
import functools

import jax
import jax.numpy as jnp
from jax.experimental import pallas as pl
from jax.experimental.pallas import tpu as pltpu

LANES = 128
TILE_ROWS = 8192          # (8192, 128) f32 = 4 MiB per input per pipeline buffer
NUM_SHARDS = 2            # leading "parallel" grid axis (one shard per TensorCore on v7x)
VMEM_LIMIT_BYTES = 48 * 1024 * 1024   # 3 inputs x 2 bufs x 4 MiB + headroom; < v7x physical


def _mse_kernel(*refs, ignore_index, has_weights, n_valid, tile_rows, bps,
                full_blocks, num_grid_blocks):
    """Accumulate per-shard masked sums of (weighted) squared error (and counts)."""
    it = iter(refs)
    pred_ref = next(it)
    tgt_ref = next(it)
    w_ref = next(it) if has_weights else None
    sum_ref = next(it)                                    # (1, 8, LANES), resident output
    cnt_ref = next(it) if ignore_index is not None else None

    c = pl.program_id(0)       # shard index (parallel axis)
    i = pl.program_id(1)       # reduction step within the shard (arbitrary axis)

    @pl.when(i == 0)
    def _():
        sum_ref[...] = jnp.zeros_like(sum_ref)
        if ignore_index is not None:
            cnt_ref[...] = jnp.zeros_like(cnt_ref)

    p = pred_ref[...].astype(jnp.float32)
    t = tgt_ref[...].astype(jnp.float32)
    sq = (p - t) * (p - t)
    if has_weights:
        sq = sq * w_ref[...].astype(jnp.float32)
    keep = (t != jnp.float32(ignore_index)) if ignore_index is not None else None

    def _accumulate(mask_pad):
        s = sq
        v = keep
        if mask_pad:
            # Global flat element index of every element of this (possibly
            # partial / duplicated) block; anything >= n_valid is padding or
            # out-of-bounds garbage.  Only the last real block (and a possible
            # clamped duplicate on an uneven shard split) ever takes this path.
            g = c * bps + i
            row_ids = jax.lax.broadcasted_iota(jnp.int32, (tile_rows, LANES), 0)
            lane_ids = jax.lax.broadcasted_iota(jnp.int32, (tile_rows, LANES), 1)
            flat = (g * tile_rows + row_ids) * LANES + lane_ids   # < 2^31 for real tensors
            in_bounds = flat < n_valid
            v = in_bounds if v is None else jnp.logical_and(v, in_bounds)
        if v is not None:
            s = jnp.where(v, s, 0.0)
        # Reduce the block to one (8, LANES) vreg tile (pure elementwise vreg
        # adds, no XLU) and accumulate into the resident output block.
        sum_ref[...] += jnp.sum(s.reshape(tile_rows // 8, 8, LANES), axis=0)[None]
        if ignore_index is not None:
            cv = v.astype(jnp.float32)
            cnt_ref[...] += jnp.sum(cv.reshape(tile_rows // 8, 8, LANES), axis=0)[None]

    if full_blocks >= num_grid_blocks:
        _accumulate(False)           # no block can contain out-of-bounds elements
    elif full_blocks == 0:
        _accumulate(True)            # every block may contain out-of-bounds elements
    else:
        needs_mask = (c * bps + i) >= full_blocks

        @pl.when(jnp.logical_not(needs_mask))
        def _():
            _accumulate(False)

        @pl.when(needs_mask)
        def _():
            _accumulate(True)


def mse_loss(pred, target, weights=None, ignore_index=255, max_tile_rows=TILE_ROWS):
    """Pallas TPU implementation of MSELoss.forward (mean over non-ignored)."""
    assert pred.shape == target.shape
    assert max_tile_rows % 8 == 0 and max_tile_rows > 0
    has_weights = weights is not None
    if has_weights:
        assert weights.shape == pred.shape

    n = pred.size
    flats = [pred.reshape(-1), target.reshape(-1)]
    if has_weights:
        flats.append(weights.reshape(-1))

    # Pad (a copy) only up to a multiple of one lane row (128); the ragged tail
    # is masked in-kernel by flat index.  Small single-block inputs additionally
    # round rows up to a multiple of 8 (a <= 4 MiB copy) so block shapes stay
    # (8, 128)-aligned; large inputs with n % 128 == 0 are reshaped copy-free.
    rows = pl.cdiv(n, LANES)
    if rows < max_tile_rows and rows % 8 != 0:
        rows = ((rows + 7) // 8) * 8
    n_padded = rows * LANES
    if n_padded != n:
        flats = [jnp.pad(f, (0, n_padded - n)) for f in flats]
    mats = [f.reshape(rows, LANES) for f in flats]

    tile_rows = min(max_tile_rows, rows)        # always a multiple of 8
    nblocks = pl.cdiv(rows, tile_rows)
    num_shards = NUM_SHARDS if nblocks >= NUM_SHARDS else 1
    bps = pl.cdiv(nblocks, num_shards)          # blocks per shard
    num_grid_blocks = num_shards * bps
    grid = (num_shards, bps)
    # Blocks with global index < full_blocks are entirely in-bounds (no pad mask).
    full_blocks = n // (tile_rows * LANES)

    if num_grid_blocks == nblocks:
        data_map = lambda c, i: (c * bps + i, 0)
    else:
        # Uneven shard split: clamp the trailing duplicate block of the last
        # shard onto the last real block; its contribution is zeroed in-kernel.
        data_map = lambda c, i: (jnp.minimum(c * bps + i, nblocks - 1), 0)

    kernel = functools.partial(
        _mse_kernel,
        ignore_index=ignore_index,
        has_weights=has_weights,
        n_valid=n,
        tile_rows=tile_rows,
        bps=bps,
        full_blocks=full_blocks,
        num_grid_blocks=num_grid_blocks,
    )

    in_specs = [pl.BlockSpec((tile_rows, LANES), data_map)] * len(mats)
    out_spec = pl.BlockSpec((1, 8, LANES), lambda c, i: (c, 0, 0))
    out_shape = [jax.ShapeDtypeStruct((num_shards, 8, LANES), jnp.float32)]
    out_specs = [out_spec]
    if ignore_index is not None:
        out_shape.append(jax.ShapeDtypeStruct((num_shards, 8, LANES), jnp.float32))
        out_specs.append(out_spec)

    bytes_accessed = sum(int(m.size) * m.dtype.itemsize for m in mats)
    bytes_accessed += sum(int(s.size) * 4 for s in out_shape)
    flops = (4 if has_weights else 3) * n

    outs = pl.pallas_call(
        kernel,
        grid=grid,
        in_specs=in_specs,
        out_specs=out_specs,
        out_shape=out_shape,
        compiler_params=pltpu.CompilerParams(
            dimension_semantics=("parallel", "arbitrary"),
            vmem_limit_bytes=VMEM_LIMIT_BYTES,
        ),
        cost_estimate=pl.CostEstimate(
            flops=flops, transcendentals=0, bytes_accessed=bytes_accessed
        ),
    )(*mats)

    if ignore_index is not None:
        total, count = outs
        # NOTE: count accumulates in f32 (exact up to ~2^24 per lane per shard);
        # division by zero (everything ignored) gives NaN, matching torch's
        # mean over an empty selection.
        return jnp.sum(total) / jnp.sum(count)
    return jnp.sum(outs[0]) / jnp.float32(n)


if __name__ == "__main__":
    key = jax.random.PRNGKey(0)
    k1, k2, k3, k4 = jax.random.split(key, 4)

    # small NCHW-style shapes: batch=2, channels=4, spatial=16x16
    shape = (2, 4, 16, 16)
    pred = jax.random.normal(k1, shape, dtype=jnp.float32)
    target = jax.random.normal(k2, shape, dtype=jnp.float32)
    ignore_mask = jax.random.bernoulli(k3, p=0.1, shape=shape)
    target = jnp.where(ignore_mask, jnp.float32(255.0), target)

    sq = (pred - target) ** 2
    valid = target != 255.0
    denom = jnp.sum(valid.astype(jnp.float32))

    # unweighted, ignore_index=255
    loss = mse_loss(pred, target)
    jax.block_until_ready(loss)
    ref = jnp.sum(jnp.where(valid, sq, 0.0)) / denom
    assert jnp.allclose(loss, ref, rtol=1e-5, atol=1e-6), (loss, ref)

    # weighted, ignore_index=255
    w = jax.random.uniform(k4, shape, dtype=jnp.float32)
    loss_w = mse_loss(pred, target, weights=w)
    jax.block_until_ready(loss_w)
    ref_w = jnp.sum(jnp.where(valid, sq * w, 0.0)) / denom
    assert jnp.allclose(loss_w, ref_w, rtol=1e-5, atol=1e-6), (loss_w, ref_w)

    # ignore_index=None path (denominator is the true element count n)
    loss_n = mse_loss(pred, target, ignore_index=None)
    jax.block_until_ready(loss_n)
    ref_n = jnp.mean(sq)
    assert jnp.allclose(loss_n, ref_n, rtol=1e-5, atol=1e-6), (loss_n, ref_n)

    # ragged size (n not a multiple of 128): exercises pad + all-blocks-masked path
    shape2 = (3, 5, 7, 11)  # 1155 elements
    p2 = jax.random.normal(jax.random.PRNGKey(1), shape2, dtype=jnp.float32)
    t2 = jax.random.normal(jax.random.PRNGKey(2), shape2, dtype=jnp.float32)
    loss2 = mse_loss(p2, t2, ignore_index=None)
    jax.block_until_ready(loss2)
    ref2 = jnp.mean((p2 - t2) ** 2)
    assert jnp.allclose(loss2, ref2, rtol=1e-5, atol=1e-6), (loss2, ref2)
    loss2b = mse_loss(p2, t2)  # no target equals 255 -> same as plain mean
    jax.block_until_ready(loss2b)
    assert jnp.allclose(loss2b, ref2, rtol=1e-5, atol=1e-6), (loss2b, ref2)

    # sharded multi-block grid with uneven split + ragged last block
    # (small tile override so the 2-shard / clamped-duplicate path is exercised
    # at a small size; 1040 rows with tile 64 -> 17 blocks over a (2, 9) grid)
    shape3 = (2, 4, 128, 130)  # 133120 elems, multiple of 128 but not of 8192
    kA, kB, kC, kD = jax.random.split(jax.random.PRNGKey(3), 4)
    p3 = jax.random.normal(kA, shape3, dtype=jnp.float32)
    t3 = jax.random.normal(kB, shape3, dtype=jnp.float32)
    m3 = jax.random.bernoulli(kC, p=0.1, shape=shape3)
    t3 = jnp.where(m3, jnp.float32(255.0), t3)
    w3 = jax.random.uniform(kD, shape3, dtype=jnp.float32)
    loss3 = mse_loss(p3, t3, weights=w3, max_tile_rows=64)
    jax.block_until_ready(loss3)
    valid3 = t3 != 255.0
    ref3 = jnp.sum(jnp.where(valid3, (p3 - t3) ** 2 * w3, 0.0)) / jnp.sum(
        valid3.astype(jnp.float32)
    )
    assert jnp.allclose(loss3, ref3, rtol=1e-4, atol=1e-6), (loss3, ref3)
    # same data through the default (single-block) path
    loss3b = mse_loss(p3, t3, weights=w3)
    jax.block_until_ready(loss3b)
    assert jnp.allclose(loss3b, ref3, rtol=1e-4, atol=1e-6), (loss3b, ref3)

    # exact-multiple case: even shard split, statically mask-free fast path
    shape4 = (2, 4, 128, 128)  # 131072 elems = 1024 rows; tile 256 -> (2, 2) grid
    p4 = jax.random.normal(kA, shape4, dtype=jnp.float32)
    t4 = jax.random.normal(kB, shape4, dtype=jnp.float32)
    t4 = jnp.where(jax.random.bernoulli(kC, p=0.05, shape=shape4), jnp.float32(255.0), t4)
    w4 = jax.random.uniform(kD, shape4, dtype=jnp.float32)
    loss4 = mse_loss(p4, t4, weights=w4, max_tile_rows=256)
    jax.block_until_ready(loss4)
    valid4 = t4 != 255.0
    ref4 = jnp.sum(jnp.where(valid4, (p4 - t4) ** 2 * w4, 0.0)) / jnp.sum(
        valid4.astype(jnp.float32)
    )
    assert jnp.allclose(loss4, ref4, rtol=1e-4, atol=1e-6), (loss4, ref4)

    print("KERNEL_OK")
</pallas_src>

<mosaic_0001>
module attributes {stable_mosaic.version = 11 : i64} {
  func.func @_mse_kernel(%arg0: i32, %arg1: i32, %arg2: memref<16x128xf32, #tpu.memory_space<vmem>>, %arg3: memref<16x128xf32, #tpu.memory_space<vmem>>, %arg4: memref<1x8x128xf32, #tpu.memory_space<vmem>>, %arg5: memref<1x8x128xf32, #tpu.memory_space<vmem>>) attributes {dimension_semantics = [#tpu.dimension_semantics<parallel>, #tpu.dimension_semantics<arbitrary>], iteration_bounds = array<i64: 1, 1>, scalar_prefetch = 0 : i64, scratch_operands = 0 : i64, tpu.core_type = #tpu.core_type<tc>, window_params = [{transform_indices = @transform_0, window_bounds = array<i64: 16, 128>}, {transform_indices = @transform_1, window_bounds = array<i64: 16, 128>}, {transform_indices = @transform_2, window_bounds = array<i64: 1, 8, 128>}, {transform_indices = @transform_3, window_bounds = array<i64: 1, 8, 128>}]} {
    %c0_i32 = arith.constant 0 : i32
    %0 = arith.cmpi eq, %arg1, %c0_i32 : i32
    %1 = arith.extui %0 : i1 to i32
    %c0_i32_0 = arith.constant 0 : i32
    %2 = arith.cmpi ne, %1, %c0_i32_0 : i32
    scf.if %2 {
      %cst_19 = arith.constant 0.000000e+00 : f32
      %26 = vector.broadcast %cst_19 : f32 to vector<1x8x128xf32>
      %c0_20 = arith.constant 0 : index
      %c0_21 = arith.constant 0 : index
      %c0_22 = arith.constant 0 : index
      %27 = vector.load %arg4[%c0_20, %c0_21, %c0_22] : memref<1x8x128xf32, #tpu.memory_space<vmem>>, vector<1x8x128xf32>
      tpu.vector_store %arg4[%c0_20, %c0_21, %c0_22], %26 {strides = array<i32>} : memref<1x8x128xf32, #tpu.memory_space<vmem>>, vector<1x8x128xf32>,
      %cst_23 = arith.constant 0.000000e+00 : f32
      %28 = vector.broadcast %cst_23 : f32 to vector<1x8x128xf32>
      %c0_24 = arith.constant 0 : index
      %c0_25 = arith.constant 0 : index
      %c0_26 = arith.constant 0 : index
      %29 = vector.load %arg5[%c0_24, %c0_25, %c0_26] : memref<1x8x128xf32, #tpu.memory_space<vmem>>, vector<1x8x128xf32>
      tpu.vector_store %arg5[%c0_24, %c0_25, %c0_26], %28 {strides = array<i32>} : memref<1x8x128xf32, #tpu.memory_space<vmem>>, vector<1x8x128xf32>,
    } else {
    }
    %c0 = arith.constant 0 : index
    %c0_1 = arith.constant 0 : index
    %3 = vector.load %arg2[%c0, %c0_1] : memref<16x128xf32, #tpu.memory_space<vmem>>, vector<16x128xf32>
    %c0_2 = arith.constant 0 : index
    %c0_3 = arith.constant 0 : index
    %4 = vector.load %arg3[%c0_2, %c0_3] : memref<16x128xf32, #tpu.memory_space<vmem>>, vector<16x128xf32>
    %5 = arith.subf %3, %4 : vector<16x128xf32>
    %6 = arith.subf %3, %4 : vector<16x128xf32>
    %7 = arith.mulf %5, %6 : vector<16x128xf32>
    %cst = arith.constant 2.550000e+02 : f32
    %8 = vector.broadcast %cst : f32 to vector<16x128xf32>
    %9 = arith.cmpf one, %4, %8 : vector<16x128xf32>
    %cst_4 = arith.constant 0.000000e+00 : f32
    %10 = vector.broadcast %cst_4 : f32 to vector<16x128xf32>
    %11 = arith.select %9, %7, %10 : vector<16x128xi1>, vector<16x128xf32>
    %c0_5 = arith.constant 0 : index
    %c0_6 = arith.constant 0 : index
    %c0_7 = arith.constant 0 : index
    %12 = vector.load %arg4[%c0_5, %c0_6, %c0_7] : memref<1x8x128xf32, #tpu.memory_space<vmem>>, vector<1x8x128xf32>
    %13 = vector.shape_cast %11 : vector<16x128xf32> to vector<2x8x128xf32>
    %cst_8 = arith.constant dense<0.000000e+00> : vector<8x128xf32>
    %14 = vector.multi_reduction <add>, %13, %cst_8 [0] : vector<2x8x128xf32> to vector<8x128xf32>
    %15 = vector.shape_cast %14 : vector<8x128xf32> to vector<1x8x128xf32>
    %16 = arith.addf %12, %15 : vector<1x8x128xf32>
    %c0_9 = arith.constant 0 : index
    %c0_10 = arith.constant 0 : index
    %c0_11 = arith.constant 0 : index
    %17 = vector.load %arg4[%c0_9, %c0_10, %c0_11] : memref<1x8x128xf32, #tpu.memory_space<vmem>>, vector<1x8x128xf32>
    tpu.vector_store %arg4[%c0_9, %c0_10, %c0_11], %16 {strides = array<i32>} : memref<1x8x128xf32, #tpu.memory_space<vmem>>, vector<1x8x128xf32>,
    %18 = arith.extui %9 : vector<16x128xi1> to vector<16x128xi32>
    %19 = arith.sitofp %18 : vector<16x128xi32> to vector<16x128xf32>
    %c0_12 = arith.constant 0 : index
    %c0_13 = arith.constant 0 : index
    %c0_14 = arith.constant 0 : index
    %20 = vector.load %arg5[%c0_12, %c0_13, %c0_14] : memref<1x8x128xf32, #tpu.memory_space<vmem>>, vector<1x8x128xf32>
    %21 = vector.shape_cast %19 : vector<16x128xf32> to vector<2x8x128xf32>
    %cst_15 = arith.constant dense<0.000000e+00> : vector<8x128xf32>
    %22 = vector.multi_reduction <add>, %21, %cst_15 [0] : vector<2x8x128xf32> to vector<8x128xf32>
    %23 = vector.shape_cast %22 : vector<8x128xf32> to vector<1x8x128xf32>
    %24 = arith.addf %20, %23 : vector<1x8x128xf32>
    %c0_16 = arith.constant 0 : index
    %c0_17 = arith.constant 0 : index
    %c0_18 = arith.constant 0 : index
    %25 = vector.load %arg5[%c0_16, %c0_17, %c0_18] : memref<1x8x128xf32, #tpu.memory_space<vmem>>, vector<1x8x128xf32>
    tpu.vector_store %arg5[%c0_16, %c0_17, %c0_18], %24 {strides = array<i32>} : memref<1x8x128xf32, #tpu.memory_space<vmem>>, vector<1x8x128xf32>,
    return
  }
  func.func @transform_0(%arg0: i32, %arg1: i32) -> (i32, i32) {
    %c1_i32 = arith.constant 1 : i32
    %0 = arith.muli %arg0, %c1_i32 : i32
    %1 = arith.addi %0, %arg1 : i32
    %c0_i32 = arith.constant 0 : i32
    %c0_i32_0 = arith.constant 0 : i32
    return %1, %c0_i32 : i32, i32
  }
  func.func @transform_1(%arg0: i32, %arg1: i32) -> (i32, i32) {
    %c1_i32 = arith.constant 1 : i32
    %0 = arith.muli %arg0, %c1_i32 : i32
    %1 = arith.addi %0, %arg1 : i32
    %c0_i32 = arith.constant 0 : i32
    %c0_i32_0 = arith.constant 0 : i32
    return %1, %c0_i32 : i32, i32
  }
  func.func @transform_2(%arg0: i32, %arg1: i32) -> (i32, i32, i32) {
    %c0_i32 = arith.constant 0 : i32
    %c0_i32_0 = arith.constant 0 : i32
    %c0_i32_1 = arith.constant 0 : i32
    return %arg0, %c0_i32, %c0_i32_0 : i32, i32, i32
  }
  func.func @transform_3(%arg0: i32, %arg1: i32) -> (i32, i32, i32) {
    %c0_i32 = arith.constant 0 : i32
    %c0_i32_0 = arith.constant 0 : i32
    %c0_i32_1 = arith.constant 0 : i32
    return %arg0, %c0_i32, %c0_i32_0 : i32, i32, i32
  }
}

</mosaic_0001>

<llo_original>
// kernel: tpu_custom_call.1
$region0: #{tpu_custom_call.1}
  #allocation0 [shape = 'u32[]', space=smem, size = 0x4, offset = 0x4, fixed_abs, tag = 'smem constant byte address 0x4 - core index']
  #allocation1 [shape = 'u32[72,128]{1,0:T(1,128)}', space=vmem, size = 0x9000, scoped, tag = 'internal scratch']
  %s0 = inlined_call_operand.hbm [shape: f32[16,128], index: 0, kind: input, shape index: {}]
  %s1 = inlined_call_operand.hbm [shape: f32[16,128], index: 1, kind: input, shape index: {}]
  %s2 = inlined_call_operand.hbm [shape: f32[1,8,128], index: 2, kind: output, shape index: {0}]
  %s3 = inlined_call_operand.hbm [shape: f32[1,8,128], index: 3, kind: output, shape index: {1}]
  %4 = xla_tuple %s2, %s3
  %s5 = sld [smem:[#allocation0]]
  $region38: #{tpu_custom_call.1} parent=0
    _
  %s7 = ssub.s32 1, %s5
  %s8 = scalar_select 0, %s7, %s5
  $region1: #{tpu_custom_call.1} parent=0
    #allocation2 [shape = 'u8[8192]{0}', space=vmem, size = 0x2000, scoped, tag = 'input window, operand 0, single buffered']
    #allocation3 [shape = 's32[1]{0}', space=sflag, size = 0x4, scoped, tag = 'scoped memory for tpu_custom_call.1']
    #allocation4 [shape = 's32[1]{0}', space=sflag, size = 0x4, scoped, tag = 'scoped memory for tpu_custom_call.1']
    #allocation5 [shape = 'u8[8192]{0}', space=vmem, size = 0x2000, scoped, tag = 'input window, operand 1, single buffered']
    #allocation6 [shape = 's32[1]{0}', space=sflag, size = 0x4, scoped, tag = 'scoped memory for tpu_custom_call.1']
    #allocation7 [shape = 'u8[4096]{0}', space=vmem, size = 0x1000, scoped, tag = 'output window, operand 0, single buffered']
    #allocation8 [shape = 'u8[4096]{0}', space=vmem, size = 0x1000, scoped, tag = 'output window, operand 1, single buffered']
    #allocation9 [shape = 's32[1]{0}', space=sflag, size = 0x4, scoped, tag = 'scoped memory for tpu_custom_call.1']
    %9 = vsyncpa [#allocation3], 0
    %10 = vsyncpa [#allocation6], 0
    %11 = vsyncpa [#allocation4], 0
    %12 = vsyncpa [#allocation9], 0
    // Predicated region
    $region2: #{tpu_custom_call.1} parent=1 // pred_check
      _
    $region3: #{tpu_custom_call.1} parent=1 // pred_check_branch
      %14 = sbr.rel (0) target = $region5
    $region4: #{tpu_custom_call.1} parent=1 // pred_region
      %s15 = sadd.s32 0, 0
      %s16 = smul.u32 2, %s15
      %18 = vsyncadd [#allocation3], 0
      %s19 = smul.addr %s16, 8
      %s20 = scalar_lea.hbm %s0, %s19
      %s21 = sshll.u32 %s20, 4
      %s22 = int_to_ptr.hbm [resolvable:$true] %s21
      %s23 = sshll.u32 [#allocation2], 4
      %s24 = int_to_ptr.vmem [resolvable:$true] %s23
      %29 = dma.hbm_to_vmem [thread:$0]  %s22, 256, %s24, [#allocation3], 128, 128, 8
    $region5: #{tpu_custom_call.1} parent=1 // pred_fallthru
      _
    // Predicated region
    $region6: #{tpu_custom_call.1} parent=1 // pred_check
      _
    $region7: #{tpu_custom_call.1} parent=1 // pred_check_branch
      %31 = sbr.rel (0) target = $region9
    $region8: #{tpu_custom_call.1} parent=1 // pred_region
      %s32 = sadd.s32 0, 0
      %s33 = smul.u32 2, %s32
      %35 = vsyncadd [#allocation6], 0
      %s36 = smul.addr %s33, 8
      %s37 = scalar_lea.hbm %s1, %s36
      %s38 = sshll.u32 %s37, 4
      %s39 = int_to_ptr.hbm [resolvable:$true] %s38
      %s40 = sshll.u32 [#allocation5], 4
      %s41 = int_to_ptr.vmem [resolvable:$true] %s40
      %46 = dma.hbm_to_vmem [thread:$0]  %s39, 256, %s41, [#allocation6], 128, 128, 8
    $region9: #{tpu_custom_call.1} parent=1 // pred_fallthru
      _
    // Predicated region
    $region10: #{tpu_custom_call.1} parent=1 // pred_check
      _
    $region11: #{tpu_custom_call.1} parent=1 // pred_check_branch
      %48 = sbr.rel (0) target = $region13
    $region12: #{tpu_custom_call.1} parent=1 // pred_region
      %50 = dma.done [#allocation3], 256
    $region13: #{tpu_custom_call.1} parent=1 // pred_fallthru
      _
    // Predicated region
    $region14: #{tpu_custom_call.1} parent=1 // pred_check
      _
    $region15: #{tpu_custom_call.1} parent=1 // pred_check_branch
      %52 = sbr.rel (0) target = $region17
    $region16: #{tpu_custom_call.1} parent=1 // pred_region
      %54 = dma.done [#allocation6], 256
    $region17: #{tpu_custom_call.1} parent=1 // pred_fallthru
      _
    %s55 = sadd.s32 0, 0
    %s56 = smul.u32 2, %s55
    %s57 = sadd.s32 0, 0
    %s58 = smul.u32 2, %s57
    %p59 = scmp.eq.s32.totalorder 0, 0
    // Predicated region
    $region18: #{tpu_custom_call.1} parent=1 // pred_check
      %p60 = pneg %p59
    $region19: #{tpu_custom_call.1} parent=1 // pred_check_branch
      %62 = sbr.rel (%p60) target = $region21
    $region20: #{tpu_custom_call.1} parent=1 // pred_region
      %63 = vst [vmem:[#allocation7] sm:$0xff] 0.0
      %64 = vst [vmem:[#allocation8] sm:$0xff] 0.0
    $region21: #{tpu_custom_call.1} parent=1 // pred_fallthru
      _
    %v65 = vld [vmem:[#allocation2] sm:$0xff]
    %v66 = vld [vmem:[#allocation2 + $0x8] sm:$0xff]
    %v67 = vld [vmem:[#allocation5] sm:$0xff]
    %v68 = vld [vmem:[#allocation5 + $0x8] sm:$0xff]
    %v69 = vsub.f32 %v65, %v67
    %v70 = vsub.f32 %v66, %v68
    %v71 = vmul.f32 %v69, %v69
    %v72 = vmul.f32 %v70, %v70
    %vm73 = vcmp.ne.f32.partialorder %v67, 255.0
    %vm74 = vcmp.ne.f32.partialorder %v68, 255.0
    %v75 = vsel %vm73, %v71, 0.0
    %v76 = vsel %vm74, %v72, 0.0
    %v77 = vld [vmem:[#allocation7] sm:$0xff]
    %v78 = vadd.f32 %v75, %v76
    %v79 = vadd.f32 %v77, %v78
    %80 = vst [vmem:[#allocation7] sm:$0xff] %v79
    %v81 = vsel %vm73, 1, 0
    %v82 = vsel %vm74, 1, 0
    %v83 = vcvt.s32.f32 %v81
    %v84 = vcvt.s32.f32 %v82
    %v85 = vld [vmem:[#allocation8] sm:$0xff]
    %v86 = vadd.f32 %v83, %v84
    %v87 = vadd.f32 %v85, %v86
    %88 = vst [vmem:[#allocation8] sm:$0xff] %v87
    // Predicated region
    $region22: #{tpu_custom_call.1} parent=1 // pred_check
      _
    $region23: #{tpu_custom_call.1} parent=1 // pred_check_branch
      %90 = sbr.rel (0) target = $region25
    $region24: #{tpu_custom_call.1} parent=1 // pred_region
      %92 = vsyncadd [#allocation4], 0
      %s94 = sshll.u32 [#allocation7], 4
      %s95 = int_to_ptr.vmem [resolvable:$true] %s94
      %s96 = sshll.u32 %s2, 4
      %s97 = int_to_ptr.hbm [resolvable:$true] %s96
      %99 = dma.vmem_to_hbm [thread:$0]  %s95, 128, %s97, [#allocation4]
    $region25: #{tpu_custom_call.1} parent=1 // pred_fallthru
      _
    // Predicated region
    $region26: #{tpu_custom_call.1} parent=1 // pred_check
      _
    $region27: #{tpu_custom_call.1} parent=1 // pred_check_branch
      %101 = sbr.rel (0) target = $region29
    $region28: #{tpu_custom_call.1} parent=1 // pred_region
      %103 = vsyncadd [#allocation9], 0
      %s105 = sshll.u32 [#allocation8], 4
      %s106 = int_to_ptr.vmem [resolvable:$true] %s105
      %s107 = sshll.u32 %s3, 4
      %s108 = int_to_ptr.hbm [resolvable:$true] %s107
      %110 = dma.vmem_to_hbm [thread:$0]  %s106, 128, %s108, [#allocation9]
    $region29: #{tpu_custom_call.1} parent=1 // pred_fallthru
      _
    // Predicated region
    $region30: #{tpu_custom_call.1} parent=1 // pred_check
      _
    $region31: #{tpu_custom_call.1} parent=1 // pred_check_branch
      %112 = sbr.rel (0) target = $region33
    $region32: #{tpu_custom_call.1} parent=1 // pred_region
      %114 = dma.done [#allocation4], 128
    $region33: #{tpu_custom_call.1} parent=1 // pred_fallthru
      _
    // Predicated region
    $region34: #{tpu_custom_call.1} parent=1 // pred_check
      _
    $region35: #{tpu_custom_call.1} parent=1 // pred_check_branch
      %116 = sbr.rel (0) target = $region37
    $region36: #{tpu_custom_call.1} parent=1 // pred_region
      %118 = dma.done [#allocation9], 128
    $region37: #{tpu_custom_call.1} parent=1 // pred_fallthru
      _
    %119 = vsyncpa [#allocation3], 1
    %120 = vsyncpa [#allocation6], 1
    %121 = vsyncpa [#allocation4], 1
    %122 = vsyncpa [#allocation9], 1

</llo_original>
